<compile_context>
chip_gen: v5e
topology: v5e:2x2
jax: 0.10.0
libtpu: 0.0.40
codegen_flags: <defaults>
</compile_context>

<pallas_src>
import jax
import jax.numpy as jnp
from jax.experimental import pallas as pl
from jax.experimental.pallas import tpu as pltpu

_LANE = 128      # vreg lane width (last dim)
_SUBLANE = 8     # f32 sublane count (second-to-last dim)


def _round_up(x, m):
    return (x + m - 1) // m * m


def _vmem_budget_bytes():
    """~75% of physical VMEM (48 MiB on v7x, 96 MiB on v5e/v6e)."""
    try:
        cap = int(pltpu.get_tpu_info().vmem_capacity_bytes)
    except Exception:
        cap = 64 << 20          # conservative, v7x-sized fallback
    return (cap * 3) // 4


def mlp_kernel(x_ref, w1_ref, b1_ref, w2_ref, b2_ref, o_ref, h_ref):
    cd = w1_ref.dtype
    # hidden = relu(x @ W1^T + b1): MXU dot (bf16 or f32 inputs) with f32
    # accumulation; bias-add and ReLU stay in f32 on the VPU (v5e has no
    # bf16 VALU path).  The f32 intermediate is staged through VMEM scratch
    # so large batch tiles do not spill vregs between the two dots.
    h = jnp.dot(x_ref[...].astype(cd), w1_ref[...],
                preferred_element_type=jnp.float32)
    h_ref[...] = jnp.maximum(h + b1_ref[...], 0.0)
    # out = hidden @ W2^T + b2: feed the MXU in the compute dtype, accumulate
    # in f32, bias-add in f32, store the natural (TB, O) block.
    out = jnp.dot(h_ref[...].astype(cd), w2_ref[...],
                  preferred_element_type=jnp.float32)
    o_ref[...] = (out + b2_ref[...]).astype(o_ref.dtype)


def prepare_params(w1, b1, w2, b2, compute_dtype=jnp.bfloat16):
    """One-time parameter prep (transpose + pad + cast) for the kernel.

    w1: (H, I), b1: (H,)   -- PyTorch nn.Linear(input_size, hidden_size) layout
    w2: (O, H), b2: (O,)   -- PyTorch nn.Linear(hidden_size, output_size) layout
    Only the hidden dim is padded (to the 128 lane width); the padded columns
    of W1^T/b1 are zero and the padded rows of W2^T are zero, which is exact
    through matmul + ReLU.
    """
    H, I = w1.shape
    O = w2.shape[0]
    H_p = _round_up(H, _LANE)
    cd = jnp.dtype(compute_dtype)
    w1_t = jnp.zeros((I, H_p), cd).at[:, :H].set(w1.T.astype(cd))
    w2_t = jnp.zeros((H_p, O), cd).at[:H, :].set(w2.T.astype(cd))
    b1_p = jnp.zeros((1, H_p), jnp.float32).at[0, :H].set(b1.astype(jnp.float32))
    b2_p = b2.astype(jnp.float32).reshape(1, O)
    return dict(w1_t=w1_t, b1_p=b1_p, w2_t=w2_t, b2_p=b2_p,
                input_size=I, hidden_size=H, output_size=O)


def _resident_spec(shape, single_buffer):
    # Constant index_map -> operand is resident across the grid; single-buffer
    # it so it does not pay a 2x VMEM footprint for zero DMA overlap.
    if single_buffer:
        return pl.BlockSpec(shape, lambda i: (0, 0), pipeline_mode=pl.Buffered(1))
    return pl.BlockSpec(shape, lambda i: (0, 0))


def neural_net_forward(x, params, *, batch_tile=None):
    """Forward pass of NeuralNet. x: (B, I) -> (B, O) float32."""
    w1_t, b1_p = params["w1_t"], params["b1_p"]
    w2_t, b2_p = params["w2_t"], params["b2_p"]
    B, I = x.shape
    H = params["hidden_size"]
    O = params["output_size"]
    H_p = w1_t.shape[1]
    assert I == params["input_size"]

    vmem_budget = _vmem_budget_bytes()
    x_isz = x.dtype.itemsize
    w_isz = w1_t.dtype.itemsize

    # ---- Batch tile: as large as possible (amortizes grid-step overhead and
    # keeps the x/out DMAs overlapped with the two dots), subject to
    #  (a) grid >= 2 so pipelining / megacore / 2-TC sharding has work,
    #  (b) fitting well inside the generation-aware VMEM budget.
    if batch_tile is None:
        tb = 1024
        while tb > _SUBLANE and pl.cdiv(B, tb) < 2:
            tb //= 2

        def _fits(t):
            need = (2 * t * I * x_isz                      # x tile, double-buffered
                    + 2 * t * O * 4                        # out tile, double-buffered
                    + t * H_p * 4                          # h scratch (f32)
                    + (I * H_p + H_p * O) * w_isz          # resident weights (1x)
                    + (H_p + O) * 4)                       # resident biases (f32)
            return need <= (vmem_budget * 3) // 5

        while tb > _SUBLANE and not _fits(tb):
            tb //= 2
        batch_tile = tb
    TB = max(_SUBLANE, _round_up(batch_tile, _SUBLANE))
    grid = (pl.cdiv(B, TB),)     # ragged tail handled by dropped OOB writes

    cost = pl.CostEstimate(
        flops=2 * B * (I * H + H * O),
        bytes_accessed=(B * I * x_isz
                        + (I * H_p + H_p * O) * w_isz
                        + (H_p + O) * 4
                        + B * O * 4),
        transcendentals=0,
    )

    # TODO(synk): for real-model sizes on v7x (64 MiB VMEM/TC), when the
    # resident weights (I*H_p + H_p*O)*itemsize approach ~40 MiB, add a
    # contraction grid axis (last, "arbitrary") with a VMEM f32 accumulator
    # and pl.when init/finalize instead of keeping both weights resident.
    def _call(single_buffer):
        return pl.pallas_call(
            mlp_kernel,
            out_shape=jax.ShapeDtypeStruct((B, O), jnp.float32),
            grid_spec=pltpu.PrefetchScalarGridSpec(
                num_scalar_prefetch=0,
                grid=grid,
                in_specs=[
                    pl.BlockSpec((TB, I), lambda i: (i, 0)),     # x tile over batch
                    _resident_spec((I, H_p), single_buffer),     # W1^T, resident
                    _resident_spec((1, H_p), single_buffer),     # b1 (f32)
                    _resident_spec((H_p, O), single_buffer),     # W2^T, resident
                    _resident_spec((1, O), single_buffer),       # b2 (f32)
                ],
                out_specs=pl.BlockSpec((TB, O), lambda i: (i, 0)),
                scratch_shapes=[pltpu.VMEM((TB, H_p), jnp.float32)],
            ),
            compiler_params=pltpu.CompilerParams(
                dimension_semantics=("parallel",),   # batch tiles -> megacore / 2 TCs
                vmem_limit_bytes=int(vmem_budget),
            ),
            cost_estimate=cost,
        )(x, w1_t, b1_p, w2_t, b2_p)

    try:
        return _call(True)
    except Exception:
        # TODO(synk): drop this fallback once pl.Buffered(1) single-buffering
        # of constant-index operands is confirmed on the deployed jax/libtpu.
        return _call(False)


if __name__ == "__main__":
    # Small but non-degenerate shapes that exercise the tiling / padding path.
    batch = 256
    input_size = 48
    hidden_size = 96
    output_size = 10

    key = jax.random.PRNGKey(0)
    kx, kw1, kb1, kw2, kb2 = jax.random.split(key, 5)

    x = jax.random.normal(kx, (batch, input_size), dtype=jnp.float32)

    # Deterministic PyTorch-style init: U(-1/sqrt(fan_in), 1/sqrt(fan_in)).
    bound1 = float(input_size) ** -0.5
    w1 = jax.random.uniform(kw1, (hidden_size, input_size), jnp.float32, -bound1, bound1)
    b1 = jax.random.uniform(kb1, (hidden_size,), jnp.float32, -bound1, bound1)
    bound2 = float(hidden_size) ** -0.5
    w2 = jax.random.uniform(kw2, (output_size, hidden_size), jnp.float32, -bound2, bound2)
    b2 = jax.random.uniform(kb2, (output_size,), jnp.float32, -bound2, bound2)

    # Reference: same math as the PyTorch module, in f32.
    ref = jnp.maximum(x @ w1.T + b1, 0.0) @ w2.T + b2

    # f32 MXU path (tight check).
    params_f32 = prepare_params(w1, b1, w2, b2, compute_dtype=jnp.float32)
    out_f32 = jax.block_until_ready(neural_net_forward(x, params_f32))
    assert out_f32.shape == (batch, output_size)
    assert jnp.allclose(out_f32, ref, atol=1e-4, rtol=1e-4), \
        float(jnp.max(jnp.abs(out_f32 - ref)))

    # Default bf16 MXU path (f32 accumulation; h is rounded to bf16 before the
    # second dot, hence the looser tolerance vs the pure-f32 reference).
    params_bf16 = prepare_params(w1, b1, w2, b2)   # compute_dtype=bf16 default
    out_bf16 = jax.block_until_ready(neural_net_forward(x, params_bf16))
    assert out_bf16.shape == (batch, output_size)
    assert jnp.allclose(out_bf16, ref, atol=5e-2, rtol=5e-2), \
        float(jnp.max(jnp.abs(out_bf16 - ref)))

    print("KERNEL_OK")
</pallas_src>

<mosaic_0001>
module attributes {stable_mosaic.version = 11 : i64} {
  func.func @mlp_kernel(%arg0: i32, %arg1: memref<128x48xf32, #tpu.memory_space<vmem>>, %arg2: memref<48x128xf32, #tpu.memory_space<vmem>>, %arg3: memref<1x128xf32, #tpu.memory_space<vmem>>, %arg4: memref<128x10xf32, #tpu.memory_space<vmem>>, %arg5: memref<1x10xf32, #tpu.memory_space<vmem>>, %arg6: memref<128x10xf32, #tpu.memory_space<vmem>>, %arg7: memref<128x128xf32, #tpu.memory_space<vmem>>) attributes {dimension_semantics = [#tpu.dimension_semantics<parallel>], iteration_bounds = array<i64: 2>, scalar_prefetch = 0 : i64, scratch_operands = 1 : i64, tpu.core_type = #tpu.core_type<tc>, window_params = [{transform_indices = @transform_0, window_bounds = array<i64: 128, 48>}, {pipeline_mode = #tpu.pipeline_mode<synchronous>, transform_indices = @transform_1, window_bounds = array<i64: 48, 128>}, {pipeline_mode = #tpu.pipeline_mode<synchronous>, transform_indices = @transform_2, window_bounds = array<i64: 1, 128>}, {pipeline_mode = #tpu.pipeline_mode<synchronous>, transform_indices = @transform_3, window_bounds = array<i64: 128, 10>}, {pipeline_mode = #tpu.pipeline_mode<synchronous>, transform_indices = @transform_4, window_bounds = array<i64: 1, 10>}, {transform_indices = @transform_5, window_bounds = array<i64: 128, 10>}]} {
    %c0 = arith.constant 0 : index
    %c0_0 = arith.constant 0 : index
    %0 = vector.load %arg1[%c0, %c0_0] : memref<128x48xf32, #tpu.memory_space<vmem>>, vector<128x48xf32>
    %c0_1 = arith.constant 0 : index
    %c0_2 = arith.constant 0 : index
    %1 = vector.load %arg2[%c0_1, %c0_2] : memref<48x128xf32, #tpu.memory_space<vmem>>, vector<48x128xf32>
    %cst = arith.constant dense<0.000000e+00> : vector<128x128xf32>
    %2 = tpu.matmul %0, %1, %cst {dimension_numbers = #tpu.dot_dimension_numbers<[1], [0], [0], [1], [0, 0, 1, 1], [], []>} : vector<128x48xf32>, vector<48x128xf32>, vector<128x128xf32> -> vector<128x128xf32>
    %c0_3 = arith.constant 0 : index
    %c0_4 = arith.constant 0 : index
    %3 = vector.load %arg3[%c0_3, %c0_4] : memref<1x128xf32, #tpu.memory_space<vmem>>, vector<1x128xf32>
    %4 = vector.broadcast %3 : vector<1x128xf32> to vector<128x128xf32>
    %5 = arith.addf %2, %4 : vector<128x128xf32>
    %cst_5 = arith.constant 0.000000e+00 : f32
    %6 = vector.broadcast %cst_5 : f32 to vector<128x128xf32>
    %7 = arith.maximumf %5, %6 : vector<128x128xf32>
    %c0_6 = arith.constant 0 : index
    %c0_7 = arith.constant 0 : index
    %8 = vector.load %arg7[%c0_6, %c0_7] : memref<128x128xf32, #tpu.memory_space<vmem>>, vector<128x128xf32>
    tpu.vector_store %arg7[%c0_6, %c0_7], %7 {strides = array<i32>} : memref<128x128xf32, #tpu.memory_space<vmem>>, vector<128x128xf32>,
    %c0_8 = arith.constant 0 : index
    %c0_9 = arith.constant 0 : index
    %9 = vector.load %arg7[%c0_8, %c0_9] : memref<128x128xf32, #tpu.memory_space<vmem>>, vector<128x128xf32>
    %c0_10 = arith.constant 0 : index
    %c0_11 = arith.constant 0 : index
    %10 = vector.load %arg4[%c0_10, %c0_11] : memref<128x10xf32, #tpu.memory_space<vmem>>, vector<128x10xf32>
    %cst_12 = arith.constant dense<0.000000e+00> : vector<128x10xf32>
    %11 = tpu.matmul %9, %10, %cst_12 {dimension_numbers = #tpu.dot_dimension_numbers<[1], [0], [0], [1], [0, 0, 1, 1], [], []>} : vector<128x128xf32>, vector<128x10xf32>, vector<128x10xf32> -> vector<128x10xf32>
    %c0_13 = arith.constant 0 : index
    %c0_14 = arith.constant 0 : index
    %12 = vector.load %arg5[%c0_13, %c0_14] : memref<1x10xf32, #tpu.memory_space<vmem>>, vector<1x10xf32>
    %13 = vector.broadcast %12 : vector<1x10xf32> to vector<128x10xf32>
    %14 = arith.addf %11, %13 : vector<128x10xf32>
    %c0_15 = arith.constant 0 : index
    %c0_16 = arith.constant 0 : index
    %15 = vector.load %arg6[%c0_15, %c0_16] : memref<128x10xf32, #tpu.memory_space<vmem>>, vector<128x10xf32>
    tpu.vector_store %arg6[%c0_15, %c0_16], %14 {strides = array<i32>} : memref<128x10xf32, #tpu.memory_space<vmem>>, vector<128x10xf32>,
    return
  }
  func.func @transform_0(%arg0: i32) -> (i32, i32) {
    %c0_i32 = arith.constant 0 : i32
    %c0_i32_0 = arith.constant 0 : i32
    return %arg0, %c0_i32 : i32, i32
  }
  func.func @transform_1(%arg0: i32) -> (i32, i32) {
    %c0_i32 = arith.constant 0 : i32
    %c0_i32_0 = arith.constant 0 : i32
    %c0_i32_1 = arith.constant 0 : i32
    return %c0_i32, %c0_i32_0 : i32, i32
  }
  func.func @transform_2(%arg0: i32) -> (i32, i32) {
    %c0_i32 = arith.constant 0 : i32
    %c0_i32_0 = arith.constant 0 : i32
    %c0_i32_1 = arith.constant 0 : i32
    return %c0_i32, %c0_i32_0 : i32, i32
  }
  func.func @transform_3(%arg0: i32) -> (i32, i32) {
    %c0_i32 = arith.constant 0 : i32
    %c0_i32_0 = arith.constant 0 : i32
    %c0_i32_1 = arith.constant 0 : i32
    return %c0_i32, %c0_i32_0 : i32, i32
  }
  func.func @transform_4(%arg0: i32) -> (i32, i32) {
    %c0_i32 = arith.constant 0 : i32
    %c0_i32_0 = arith.constant 0 : i32
    %c0_i32_1 = arith.constant 0 : i32
    return %c0_i32, %c0_i32_0 : i32, i32
  }
  func.func @transform_5(%arg0: i32) -> (i32, i32) {
    %c0_i32 = arith.constant 0 : i32
    %c0_i32_0 = arith.constant 0 : i32
    return %arg0, %c0_i32 : i32, i32
  }
}

module attributes {stable_mosaic.version = 11 : i64} {
  func.func @mlp_kernel(%arg0: i32, %arg1: memref<128x48xf32, #tpu.memory_space<vmem>>, %arg2: memref<48x128xf32, #tpu.memory_space<vmem>>, %arg3: memref<1x128xf32, #tpu.memory_space<vmem>>, %arg4: memref<128x10xf32, #tpu.memory_space<vmem>>, %arg5: memref<1x10xf32, #tpu.memory_space<vmem>>, %arg6: memref<128x10xf32, #tpu.memory_space<vmem>>, %arg7: memref<128x128xf32, #tpu.memory_space<vmem>>) attributes {dimension_semantics = [#tpu.dimension_semantics<parallel>], iteration_bounds = array<i64: 2>, scalar_prefetch = 0 : i64, scratch_operands = 1 : i64, tpu.core_type = #tpu.core_type<tc>, window_params = [{transform_indices = @transform_0, window_bounds = array<i64: 128, 48>}, {pipeline_mode = #tpu.pipeline_mode<synchronous>, transform_indices = @transform_1, window_bounds = array<i64: 48, 128>}, {pipeline_mode = #tpu.pipeline_mode<synchronous>, transform_indices = @transform_2, window_bounds = array<i64: 1, 128>}, {pipeline_mode = #tpu.pipeline_mode<synchronous>, transform_indices = @transform_3, window_bounds = array<i64: 128, 10>}, {pipeline_mode = #tpu.pipeline_mode<synchronous>, transform_indices = @transform_4, window_bounds = array<i64: 1, 10>}, {transform_indices = @transform_5, window_bounds = array<i64: 128, 10>}]} {
    %c0 = arith.constant 0 : index
    %c0_0 = arith.constant 0 : index
    %0 = vector.load %arg1[%c0, %c0_0] : memref<128x48xf32, #tpu.memory_space<vmem>>, vector<128x48xf32>
    %c0_1 = arith.constant 0 : index
    %c0_2 = arith.constant 0 : index
    %1 = vector.load %arg2[%c0_1, %c0_2] : memref<48x128xf32, #tpu.memory_space<vmem>>, vector<48x128xf32>
    %cst = arith.constant dense<0.000000e+00> : vector<128x128xf32>
    %2 = tpu.matmul %0, %1, %cst {dimension_numbers = #tpu.dot_dimension_numbers<[1], [0], [0], [1], [0, 0, 1, 1], [], []>} : vector<128x48xf32>, vector<48x128xf32>, vector<128x128xf32> -> vector<128x128xf32>
    %c0_3 = arith.constant 0 : index
    %c0_4 = arith.constant 0 : index
    %3 = vector.load %arg3[%c0_3, %c0_4] : memref<1x128xf32, #tpu.memory_space<vmem>>, vector<1x128xf32>
    %4 = vector.broadcast %3 : vector<1x128xf32> to vector<128x128xf32>
    %5 = arith.addf %2, %4 : vector<128x128xf32>
    %cst_5 = arith.constant 0.000000e+00 : f32
    %6 = vector.broadcast %cst_5 : f32 to vector<128x128xf32>
    %7 = arith.maximumf %5, %6 : vector<128x128xf32>
    %c0_6 = arith.constant 0 : index
    %c0_7 = arith.constant 0 : index
    %8 = vector.load %arg7[%c0_6, %c0_7] : memref<128x128xf32, #tpu.memory_space<vmem>>, vector<128x128xf32>
    tpu.vector_store %arg7[%c0_6, %c0_7], %7 {strides = array<i32>} : memref<128x128xf32, #tpu.memory_space<vmem>>, vector<128x128xf32>,
    %c0_8 = arith.constant 0 : index
    %c0_9 = arith.constant 0 : index
    %9 = vector.load %arg7[%c0_8, %c0_9] : memref<128x128xf32, #tpu.memory_space<vmem>>, vector<128x128xf32>
    %c0_10 = arith.constant 0 : index
    %c0_11 = arith.constant 0 : index
    %10 = vector.load %arg4[%c0_10, %c0_11] : memref<128x10xf32, #tpu.memory_space<vmem>>, vector<128x10xf32>
    %cst_12 = arith.constant dense<0.000000e+00> : vector<128x10xf32>
    %11 = tpu.matmul %9, %10, %cst_12 {dimension_numbers = #tpu.dot_dimension_numbers<[1], [0], [0], [1], [0, 0, 1, 1], [], []>} : vector<128x128xf32>, vector<128x10xf32>, vector<128x10xf32> -> vector<128x10xf32>
    %c0_13 = arith.constant 0 : index
    %c0_14 = arith.constant 0 : index
    %12 = vector.load %arg5[%c0_13, %c0_14] : memref<1x10xf32, #tpu.memory_space<vmem>>, vector<1x10xf32>
    %13 = vector.broadcast %12 : vector<1x10xf32> to vector<128x10xf32>
    %14 = arith.addf %11, %13 : vector<128x10xf32>
    %c0_15 = arith.constant 0 : index
    %c0_16 = arith.constant 0 : index
    %15 = vector.load %arg6[%c0_15, %c0_16] : memref<128x10xf32, #tpu.memory_space<vmem>>, vector<128x10xf32>
    tpu.vector_store %arg6[%c0_15, %c0_16], %14 {strides = array<i32>} : memref<128x10xf32, #tpu.memory_space<vmem>>, vector<128x10xf32>,
    return
  }
  func.func @transform_0(%arg0: i32) -> (i32, i32) {
    %c0_i32 = arith.constant 0 : i32
    %c0_i32_0 = arith.constant 0 : i32
    return %arg0, %c0_i32 : i32, i32
  }
  func.func @transform_1(%arg0: i32) -> (i32, i32) {
    %c0_i32 = arith.constant 0 : i32
    %c0_i32_0 = arith.constant 0 : i32
    %c0_i32_1 = arith.constant 0 : i32
    return %c0_i32, %c0_i32_0 : i32, i32
  }
  func.func @transform_2(%arg0: i32) -> (i32, i32) {
    %c0_i32 = arith.constant 0 : i32
    %c0_i32_0 = arith.constant 0 : i32
    %c0_i32_1 = arith.constant 0 : i32
    return %c0_i32, %c0_i32_0 : i32, i32
  }
  func.func @transform_3(%arg0: i32) -> (i32, i32) {
    %c0_i32 = arith.constant 0 : i32
    %c0_i32_0 = arith.constant 0 : i32
    %c0_i32_1 = arith.constant 0 : i32
    return %c0_i32, %c0_i32_0 : i32, i32
  }
  func.func @transform_4(%arg0: i32) -> (i32, i32) {
    %c0_i32 = arith.constant 0 : i32
    %c0_i32_0 = arith.constant 0 : i32
    %c0_i32_1 = arith.constant 0 : i32
    return %c0_i32, %c0_i32_0 : i32, i32
  }
  func.func @transform_5(%arg0: i32) -> (i32, i32) {
    %c0_i32 = arith.constant 0 : i32
    %c0_i32_0 = arith.constant 0 : i32
    return %arg0, %c0_i32 : i32, i32
  }
}

</mosaic_0001>

<llo_original>
// kernel: tpu_custom_call.1
$region0: #{tpu_custom_call.1}
  #allocation0 [shape = 'u32[]', space=smem, size = 0x4, offset = 0x4, fixed_abs, tag = 'smem constant byte address 0x4 - core index']
  #allocation1 [shape = 'u32[72,128]{1,0:T(1,128)}', space=vmem, size = 0x9000, scoped, tag = 'internal scratch']
  #allocation2 [shape = 'f32[128,128]{1,0:T(8,128)}', space=vmem, size = 0x10000, scoped, tag = 'scratch operand']
  %s0 = inlined_call_operand.vmem [shape: f32[256,48], index: 0, kind: input, shape index: {}]
  %s1 = inlined_call_operand.vmem [shape: f32[48,128], index: 1, kind: input, shape index: {}]
  %s2 = inlined_call_operand.vmem [shape: f32[1,128], index: 2, kind: input, shape index: {}]
  %s3 = inlined_call_operand.vmem [shape: f32[128,10], index: 3, kind: input, shape index: {}]
  %s4 = inlined_call_operand.vmem [shape: f32[1,10], index: 4, kind: input, shape index: {}]
  %s5 = inlined_call_operand.vmem [shape: f32[256,10], index: 5, kind: output, shape index: {}]
  %s6 = sld [smem:[#allocation0]]
  $region53: #{tpu_custom_call.1} parent=0
    _
  %s8 = ssub.s32 1, %s6
  %s9 = scalar_select 0, %s8, %s6
  loop: start=0, step=1, limit=4
  $region2: #{tpu_custom_call.1} parent=0 // loop_pre_header
    _
  $region3: #{tpu_custom_call.1} parent=0 // loop_header
    %s11 = sphi 0, %s15
    %p12 = scmp.ge.s32.totalorder %s11, 4
    %s21 = sphi 0, %s23
    %s24 = sphi 0, %s21
    %s25 = sphi 0, %s24
    %s41 = sphi 0, %s25
    %s45 = sphi 0, %s45
    %s47 = sphi 0, %s45
    %s48 = sphi 0, %s47
    %s62 = sphi 0, %s48
    %s66 = sphi 0, %s66
    %s68 = sphi 0, %s66
    %s69 = sphi 0, %s68
    %s83 = sphi 0, %s69
    %s87 = sphi 0, %s87
    %s89 = sphi 0, %s87
    %s90 = sphi 0, %s89
    %s104 = sphi 0, %s90
    %s108 = sphi 0, %s108
    %s110 = sphi 0, %s108
    %s111 = sphi 0, %s110
    %s125 = sphi 0, %s111
    %s131 = sphi 0, %s133
    %s134 = sphi 0, %s131
    %s135 = sphi 0, %s134
    %s151 = sphi 0, %s135
  $region4: #{tpu_custom_call.1} parent=0 // loop_header_branch
    %14 = sbr.rel (%p12) target = $region8
  $region5: #{tpu_custom_call.1} parent=0 // loop_body
    %s16 = ssub.s32 %s11, 1
    %s17 = ssub.s32 %s11, 2
    %s18 = sadd.s32 %s11, 1
    %s19 = ssub.s32 %s11, %s18
    %p20 = scmp.eq.s32.totalorder %s19, 0
    %s22 = sadd.s32 %s21, 1
    %s23 = scalar_select %p20, %s21, %s22
    %p26 = pneg %p20
    %p27 = scmp.eq.s32.totalorder %s11, 1
    %p28 = por %p26, %p27
    %p29 = scmp.ne.s32.totalorder %s21, %s24
    %p30 = scmp.eq.s32.totalorder %s11, 0
    %p31 = por %p29, %p30
    %p32 = scmp.ne.s32.totalorder %s21, %s24
    %p33 = scmp.eq.s32.totalorder %s16, 1
    %p34 = por %p32, %p33
    %p35 = scmp.ne.s32.totalorder %s24, %s25
    %p36 = scmp.eq.s32.totalorder %s16, 0
    %p37 = por %p35, %p36
    %p38 = scmp.ne.s32.totalorder %s24, %s25
    %p39 = scmp.eq.s32.totalorder %s17, 1
    %p40 = por %p38, %p39
    %p42 = scmp.ne.s32.totalorder %s25, %s41
    %p43 = scmp.eq.s32.totalorder %s17, 0
    %p44 = por %p42, %p43
    %s46 = sadd.s32 %s45, 1
    %p49 = scmp.eq.s32.totalorder %s11, 1
    %p50 = scmp.ne.s32.totalorder %s45, %s47
    %p51 = scmp.eq.s32.totalorder %s11, 0
    %p52 = por %p50, %p51
    %p53 = scmp.ne.s32.totalorder %s45, %s47
    %p54 = scmp.eq.s32.totalorder %s16, 1
    %p55 = por %p53, %p54
    %p56 = scmp.ne.s32.totalorder %s47, %s48
    %p57 = scmp.eq.s32.totalorder %s16, 0
    %p58 = por %p56, %p57
    %p59 = scmp.ne.s32.totalorder %s47, %s48
    %p60 = scmp.eq.s32.totalorder %s17, 1
    %p61 = por %p59, %p60
    %p63 = scmp.ne.s32.totalorder %s48, %s62
    %p64 = scmp.eq.s32.totalorder %s17, 0
    %p65 = por %p63, %p64
    %s67 = sadd.s32 %s66, 1
    %p70 = scmp.eq.s32.totalorder %s11, 1
    %p71 = scmp.ne.s32.totalorder %s66, %s68
    %p72 = scmp.eq.s32.totalorder %s11, 0
    %p73 = por %p71, %p72
    %p74 = scmp.ne.s32.totalorder %s66, %s68
    %p75 = scmp.eq.s32.totalorder %s16, 1
    %p76 = por %p74, %p75
    %p77 = scmp.ne.s32.totalorder %s68, %s69
    %p78 = scmp.eq.s32.totalorder %s16, 0
    %p79 = por %p77, %p78
    %p80 = scmp.ne.s32.totalorder %s68, %s69
    %p81 = scmp.eq.s32.totalorder %s17, 1
    %p82 = por %p80, %p81
    %p84 = scmp.ne.s32.totalorder %s69, %s83
    %p85 = scmp.eq.s32.totalorder %s17, 0
    %p86 = por %p84, %p85
    %s88 = sadd.s32 %s87, 1
    %p91 = scmp.eq.s32.totalorder %s11, 1
    %p92 = scmp.ne.s32.totalorder %s87, %s89
    %p93 = scmp.eq.s32.totalorder %s11, 0
    %p94 = por %p92, %p93
    %p95 = scmp.ne.s32.totalorder %s87, %s89
    %p96 = scmp.eq.s32.totalorder %s16, 1
    %p97 = por %p95, %p96
    %p98 = scmp.ne.s32.totalorder %s89, %s90
    %p99 = scmp.eq.s32.totalorder %s16, 0
    %p100 = por %p98, %p99
    %p101 = scmp.ne.s32.totalorder %s89, %s90
    %p102 = scmp.eq.s32.totalorder %s17, 1
    %p103 = por %p101, %p102
    %p105 = scmp.ne.s32.totalorder %s90, %s104
    %p106 = scmp.eq.s32.totalorder %s17, 0
    %p107 = por %p105, %p106
    %s109 = sadd.s32 %s108, 1
    %p112 = scmp.eq.s32.totalorder %s11, 1
    %p113 = scmp.ne.s32.totalorder %s108, %s110
    %p114 = scmp.eq.s32.totalorder %s11, 0
    %p115 = por %p113, %p114
    %p116 = scmp.ne.s32.totalorder %s108, %s110
    %p117 = scmp.eq.s32.totalorder %s16, 1
    %p118 = por %p116, %p117
    %p119 = scmp.ne.s32.totalorder %s110, %s111
    %p120 = scmp.eq.s32.totalorder %s16, 0
    %p121 = por %p119, %p120
    %p122 = scmp.ne.s32.totalorder %s110, %s111
    %p123 = scmp.eq.s32.totalorder %s17, 1
    %p124 = por %p122, %p123
    %p126 = scmp.ne.s32.totalorder %s111, %s125
    %p127 = scmp.eq.s32.totalorder %s17, 0
    %p128 = por %p126, %p127
    %s129 = ssub.s32 %s11, %s18
    %p130 = scmp.eq.s32.totalorder %s129, 0
    %s132 = sadd.s32 %s131, 1
    %s133 = scalar_select %p130, %s131, %s132
    %p136 = pneg %p130
    %p137 = scmp.eq.s32.totalorder %s11, 1
    %p138 = por %p136, %p137
    %p139 = scmp.ne.s32.totalorder %s131, %s134
    %p140 = scmp.eq.s32.totalorder %s11, 0
    %p141 = por %p139, %p140
    %p142 = scmp.ne.s32.totalorder %s131, %s134
    %p143 = scmp.eq.s32.totalorder %s16, 1
    %p144 = por %p142, %p143
    %p145 = scmp.ne.s32.totalorder %s134, %s135
    %p146 = scmp.eq.s32.totalorder %s16, 0
    %p147 = por %p145, %p146
    %p148 = scmp.ne.s32.totalorder %s134, %s135
    %p149 = scmp.eq.s32.totalorder %s17, 1
    %p150 = por %p148, %p149
    %p152 = scmp.ne.s32.totalorder %s135, %s151
    %p153 = scmp.eq.s32.totalorder %s17, 0
    %p154 = por %p152, %p153
    %p155 = scmp.le.s32.totalorder 1, %s11
    %p156 = scmp.lt.s32.totalorder %s11, 3
    %p157 = pnand %p155, %p156
    %p158 = pneg %p157
    // Predicated region
    $region9: #{tpu_custom_call.1} parent=5 // pred_check
      _
    $region10: #{tpu_custom_call.1} parent=5 // pred_check_branch
      %160 = sbr.rel (%p157) target = $region12
    $region11: #{tpu_custom_call.1} parent=5 // pred_region
      %s161 = ssub.s32 %s11, 1
      // Predicated region
      $region13: #{tpu_custom_call.1} parent=11 // pred_check
        %p162 = pneg %p58
      $region14: #{tpu_custom_call.1} parent=11 // pred_check_branch
        %164 = sbr.rel (%p162) target = $region16
      $region15: #{tpu_custom_call.1} parent=11 // pred_region
        _
      $region16: #{tpu_custom_call.1} parent=11 // pred_fallthru
        _
      // Predicated region
      $region17: #{tpu_custom_call.1} parent=11 // pred_check
        %p165 = pneg %p79
      $region18: #{tpu_custom_call.1} parent=11 // pred_check_branch
        %167 = sbr.rel (%p165) target = $region20
      $region19: #{tpu_custom_call.1} parent=11 // pred_region
        _
      $region20: #{tpu_custom_call.1} parent=11 // pred_fallthru
        _
      // Predicated region
      $region21: #{tpu_custom_call.1} parent=11 // pred_check
        %p168 = pneg %p100
      $region22: #{tpu_custom_call.1} parent=11 // pred_check_branch
        %170 = sbr.rel (%p168) target = $region24
      $region23: #{tpu_custom_call.1} parent=11 // pred_region
        _
      $region24: #{tpu_custom_call.1} parent=11 // pred_fallthru
        _
      // Predicated region
      $region25: #{tpu_custom_call.1} parent=11 // pred_check
        %p171 = pneg %p121
      $region26: #{tpu_custom_call.1} parent=11 // pred_check_branch
        %173 = sbr.rel (%p171) target = $region28
      $region27: #{tpu_custom_call.1} parent=11 // pred_region
        _
      $region28: #{tpu_custom_call.1} parent=11 // pred_fallthru
        _
    $region12: #{tpu_custom_call.1} parent=5 // pred_fallthru
      _
    %p174 = scmp.lt.s32.totalorder %s11, 2
    // Predicated region
    $region29: #{tpu_custom_call.1} parent=5 // pred_check
      %p175 = pneg %p174
    $region30: #{tpu_custom_call.1} parent=5 // pred_check_branch
      %177 = sbr.rel (%p175) target = $region32
    $region31: #{tpu_custom_call.1} parent=5 // pred_region
      // Predicated region
      $region33: #{tpu_custom_call.1} parent=31 // pred_check
        %p178 = pneg %p31
      $region34: #{tpu_custom_call.1} parent=31 // pred_check_branch
        %180 = sbr.rel (%p178) target = $region36
      $region35: #{tpu_custom_call.1} parent=31 // pred_region
        %s181 = smul.u32 16, %s11
        %p182 = scmp.lt.s32.totalorder %s181, 31
        %s183 = scalar_select %p182, %s181, 31
        %s184 = smul.addr %s183, 8
        %s185 = scalar_lea.vmem %s0, %s184
        %s186 = smul.u32 16, %s11
      $region36: #{tpu_custom_call.1} parent=31 // pred_fallthru
        _
    $region32: #{tpu_custom_call.1} parent=5 // pred_fallthru
      _
    %p187 = scmp.le.s32.totalorder 1, %s11
    %p188 = scmp.lt.s32.totalorder %s11, 3
    %p189 = pnand %p187, %p188
    %p190 = pneg %p189
    // Predicated region
    $region37: #{tpu_custom_call.1} parent=5 // pred_check
      _
    $region38: #{tpu_custom_call.1} parent=5 // pred_check_branch
      %192 = sbr.rel (%p189) target = $region40
    $region39: #{tpu_custom_call.1} parent=5 // pred_region
      %s193 = ssub.s32 %s11, 1
      %s194 = smul.u32 16, %s16
      %p195 = scmp.lt.s32.totalorder %s194, 31
      %s196 = scalar_select %p195, %s194, 31
      %s197 = smul.addr %s196, 8
      %s198 = scalar_lea.vmem %s0, %s197
      %p199 = pneg %p37
      %p200 = pneg %p34
      %p201 = pneg %p58
      %p202 = pneg %p55
      %p203 = pneg %p79
      %p204 = pneg %p76
      %p205 = pneg %p100
      %p206 = pneg %p97
      %p207 = pneg %p121
      %p208 = pneg %p118
      %p209 = pneg %p147
      %p210 = pneg %p144
      %s211 = smul.u32 16, %s16
      %p212 = scmp.lt.s32.totalorder %s211, 31
      %s213 = scalar_select %p212, %s211, 31
      %s214 = smul.addr %s213, 8
      %s215 = scalar_lea.vmem %s5, %s214
      %s216 = smul.u32 16, %s16
      %p217 = scmp.lt.s32.totalorder %s216, 31
      %s218 = scalar_select %p217, %s216, 31
      %s219 = smul.addr %s218, 8
      %s220 = scalar_lea.vmem %s0, %s219
      %s221 = smul.u32 16, %s16
      %s222 = smul.u32 16, %s16
      %p223 = scmp.lt.s32.totalorder %s222, 31
      %s224 = scalar_select %p223, %s222, 31
      %s225 = smul.addr %s224, 8
      %s226 = scalar_lea.vmem %s5, %s225
      %s227 = smul.u32 16, %s16
      %v228 = vld [vmem:[%s220] sm:$0xff]
      %v229 = vld [vmem:[%s220 + $0x8] sm:$0xff]
      %v230 = vld [vmem:[%s220 + $0x10] sm:$0xff]
      %v231 = vld [vmem:[%s220 + $0x18] sm:$0xff]
      %v232 = vld [vmem:[%s220 + $0x20] sm:$0xff]
      %v233 = vld [vmem:[%s220 + $0x28] sm:$0xff]
      %v234 = vld [vmem:[%s220 + $0x30] sm:$0xff]
      %v235 = vld [vmem:[%s220 + $0x38] sm:$0xff]
      %v236 = vld [vmem:[%s220 + $0x40] sm:$0xff]
      %v237 = vld [vmem:[%s220 + $0x48] sm:$0xff]
      %v238 = vld [vmem:[%s220 + $0x50] sm:$0xff]
      %v239 = vld [vmem:[%s220 + $0x58] sm:$0xff]
      %v240 = vld [vmem:[%s220 + $0x60] sm:$0xff]
      %v241 = vld [vmem:[%s220 + $0x68] sm:$0xff]
      %v242 = vld [vmem:[%s220 + $0x70] sm:$0xff]
      %v243 = vld [vmem:[%s220 + $0x78] sm:$0xff]
      %v244 = vld [vmem:[%s1] sm:$0xff]
      %v245 = vld [vmem:[%s1 + $0x8] sm:$0xff]
      %v246 = vld [vmem:[%s1 + $0x10] sm:$0xff]
      %v247 = vld [vmem:[%s1 + $0x18] sm:$0xff]
      %v248 = vld [vmem:[%s1 + $0x20] sm:$0xff]
      %v249 = vld [vmem:[%s1 + $0x28] sm:$0xff]
      %v250 = vld [vmem:[%s2] sm:$0x1]
      %v252 = vperm.slane %v250, 0
      %vm254 = vcmask 392192
      %v256 = vsel %vm254, %v228, 0
      %v259 = vsel %vm254, %v229, 0
      %v262 = vsel %vm254, %v230, 0
      %v265 = vsel %vm254, %v231, 0
      %v268 = vsel %vm254, %v232, 0
      %v271 = vsel %vm254, %v233, 0
      %v274 = vsel %vm254, %v234, 0
      %v277 = vsel %vm254, %v235, 0
      %v280 = vsel %vm254, %v236, 0
      %v283 = vsel %vm254, %v237, 0
      %v286 = vsel %vm254, %v238, 0
      %v289 = vsel %vm254, %v239, 0
      %v292 = vsel %vm254, %v240, 0
      %v295 = vsel %vm254, %v241, 0
      %v298 = vsel %vm254, %v242, 0
      %v301 = vsel %vm254, %v243, 0
      %303 = vmatpush.msra.mxu0 0.0
      %304 = vmatpush.msra.mxu0 0.0
      %305 = vmatpush.msra.mxu0 0.0
      %306 = vmatpush.msra.mxu0 0.0
      %307 = vmatpush.msra.mxu0 0.0
      %308 = vmatpush.msra.mxu0 0.0
      %309 = vmatpush.msra.mxu0 0.0
      %310 = vmatpush.msra.mxu0 0.0
      %311 = vmatpush.msra.mxu0 0.0
      %312 = vmatpush.msra.mxu0 0.0
      %313 = vmatpush.msra.mxu0 %v249
      %314 = vmatpush.msra.mxu0 %v248
      %315 = vmatpush.msra.mxu0 %v247
      %316 = vmatpush.msra.mxu0 %v246
      %317 = vmatpush.msra.mxu0 %v245
      %318 = vmatpush.msra.mxu0 %v244
      %319 = vmatmul.f32.gmra.mxu0 %v256
      %v320 = vpop.f32.mrf.mxu0
      %v321 = vadd.f32 %v252, %v320
      %322 = vmatmul.f32.gmra.mxu0 %v259
      %v323 = vpop.f32.mrf.mxu0
      %v324 = vadd.f32 %v252, %v323
      %325 = vmatmul.f32.gmra.mxu0 %v262
      %v326 = vpop.f32.mrf.mxu0
      %v327 = vadd.f32 %v252, %v326
      %328 = vmatmul.f32.gmra.mxu0 %v265
      %v329 = vpop.f32.mrf.mxu0
      %v330 = vadd.f32 %v252, %v329
      %331 = vmatmul.f32.gmra.mxu0 %v268
      %v332 = vpop.f32.mrf.mxu0
      %v333 = vadd.f32 %v252, %v332
      %334 = vmatmul.f32.gmra.mxu0 %v271
      %v335 = vpop.f32.mrf.mxu0
      %v336 = vadd.f32 %v252, %v335
      %337 = vmatmul.f32.gmra.mxu0 %v274
      %v338 = vpop.f32.mrf.mxu0
      %v339 = vadd.f32 %v252, %v338
      %340 = vmatmul.f32.gmra.mxu0 %v277
      %v341 = vpop.f32.mrf.mxu0
      %v342 = vadd.f32 %v252, %v341
      %343 = vmatmul.f32.gmra.mxu0 %v280
      %v344 = vpop.f32.mrf.mxu0
      %v345 = vadd.f32 %v252, %v344
      %346 = vmatmul.f32.gmra.mxu0 %v283
      %v347 = vpop.f32.mrf.mxu0
      %v348 = vadd.f32 %v252, %v347
      %349 = vmatmul.f32.gmra.mxu0 %v286
      %v350 = vpop.f32.mrf.mxu0
      %v351 = vadd.f32 %v252, %v350
      %352 = vmatmul.f32.gmra.mxu0 %v289
      %v353 = vpop.f32.mrf.mxu0
      %v354 = vadd.f32 %v252, %v353
      %355 = vmatmul.f32.gmra.mxu0 %v292
      %v356 = vpop.f32.mrf.mxu0
      %v357 = vadd.f32 %v252, %v356
      %358 = vmatmul.f32.gmra.mxu0 %v295
      %v359 = vpop.f32.mrf.mxu0
      %v360 = vadd.f32 %v252, %v359
      %361 = vmatmul.f32.gmra.mxu0 %v298
      %v362 = vpop.f32.mrf.mxu0
      %v363 = vadd.f32 %v252, %v362
      %364 = vmatmul.f32.gmra.mxu0 %v301
      %v365 = vpop.f32.mrf.mxu0
      %v366 = vadd.f32 %v252, %v365
      %367 = vdwg.mxu0
      %v368 = vmax.f32 %v321, 0.0
      %v369 = vmax.f32 %v324, 0.0
      %v370 = vmax.f32 %v327, 0.0
      %v371 = vmax.f32 %v330, 0.0
      %v372 = vmax.f32 %v333, 0.0
      %v373 = vmax.f32 %v336, 0.0
      %v374 = vmax.f32 %v339, 0.0
      %v375 = vmax.f32 %v342, 0.0
      %v376 = vmax.f32 %v345, 0.0
      %v377 = vmax.f32 %v348, 0.0
      %v378 = vmax.f32 %v351, 0.0
      %v379 = vmax.f32 %v354, 0.0
      %v380 = vmax.f32 %v357, 0.0
      %v381 = vmax.f32 %v360, 0.0
      %v382 = vmax.f32 %v363, 0.0
      %v383 = vmax.f32 %v366, 0.0
      %384 = vst [vmem:[#allocation2] sm:$0xff] %v368
      %385 = vst [vmem:[#allocation2 + $0x8] sm:$0xff] %v369
      %386 = vst [vmem:[#allocation2 + $0x10] sm:$0xff] %v370
      %387 = vst [vmem:[#allocation2 + $0x18] sm:$0xff] %v371
      %388 = vst [vmem:[#allocation2 + $0x20] sm:$0xff] %v372
      %389 = vst [vmem:[#allocation2 + $0x28] sm:$0xff] %v373
      %390 = vst [vmem:[#allocation2 + $0x30] sm:$0xff] %v374
      %391 = vst [vmem:[#allocation2 + $0x38] sm:$0xff] %v375
      %392 = vst [vmem:[#allocation2 + $0x40] sm:$0xff] %v376
      %393 = vst [vmem:[#allocation2 + $0x48] sm:$0xff] %v377
      %394 = vst [vmem:[#allocation2 + $0x50] sm:$0xff] %v378
      %395 = vst [vmem:[#allocation2 + $0x58] sm:$0xff] %v379
      %396 = vst [vmem:[#allocation2 + $0x60] sm:$0xff] %v380
      %397 = vst [vmem:[#allocation2 + $0x68] sm:$0xff] %v381
      %398 = vst [vmem:[#allocation2 + $0x70] sm:$0xff] %v382
      %399 = vst [vmem:[#allocation2 + $0x78] sm:$0xff] %v383
      %v400 = vld [vmem:[#allocation2] sm:$0xff]
      %v401 = vld [vmem:[#allocation2 + $0x8] sm:$0xff]
      %v402 = vld [vmem:[#allocation2 + $0x10] sm:$0xff]
      %v403 = vld [vmem:[#allocation2 + $0x18] sm:$0xff]
      %v404 = vld [vmem:[#allocation2 + $0x20] sm:$0xff]
      %v405 = vld [vmem:[#allocation2 + $0x28] sm:$0xff]
      %v406 = vld [vmem:[#allocation2 + $0x30] sm:$0xff]
      %v407 = vld [vmem:[#allocation2 + $0x38] sm:$0xff]
      %v408 = vld [vmem:[#allocation2 + $0x40] sm:$0xff]
      %v409 = vld [vmem:[#allocation2 + $0x48] sm:$0xff]
      %v410 = vld [vmem:[#allocation2 + $0x50] sm:$0xff]
      %v411 = vld [vmem:[#allocation2 + $0x58] sm:$0xff]
      %v412 = vld [vmem:[#allocation2 + $0x60] sm:$0xff]
      %v413 = vld [vmem:[#allocation2 + $0x68] sm:$0xff]
      %v414 = vld [vmem:[#allocation2 + $0x70] sm:$0xff]
      %v415 = vld [vmem:[#allocation2 + $0x78] sm:$0xff]
      %v416 = vld [vmem:[%s3] sm:$0xff]
      %v417 = vld [vmem:[%s3 + $0x8] sm:$0xff]
      %v418 = vld [vmem:[%s3 + $0x10] sm:$0xff]
      %v419 = vld [vmem:[%s3 + $0x18] sm:$0xff]
      %v420 = vld [vmem:[%s3 + $0x20] sm:$0xff]
      %v421 = vld [vmem:[%s3 + $0x28] sm:$0xff]
      %v422 = vld [vmem:[%s3 + $0x30] sm:$0xff]
      %v423 = vld [vmem:[%s3 + $0x38] sm:$0xff]
      %v424 = vld [vmem:[%s3 + $0x40] sm:$0xff]
      %v425 = vld [vmem:[%s3 + $0x48] sm:$0xff]
      %v426 = vld [vmem:[%s3 + $0x50] sm:$0xff]
      %v427 = vld [vmem:[%s3 + $0x58] sm:$0xff]
      %v428 = vld [vmem:[%s3 + $0x60] sm:$0xff]
      %v429 = vld [vmem:[%s3 + $0x68] sm:$0xff]
      %v430 = vld [vmem:[%s3 + $0x70] sm:$0xff]
      %v431 = vld [vmem:[%s3 + $0x78] sm:$0xff]
      %v432 = vld [vmem:[%s4] sm:$0x1]
      %v434 = vperm.slane %v432, 0
      %436 = vmatpush.msra.mxu0 %v431
      %437 = vmatpush.msra.mxu0 %v430
      %438 = vmatpush.msra.mxu0 %v429
      %439 = vmatpush.msra.mxu0 %v428
      %440 = vmatpush.msra.mxu0 %v427
      %441 = vmatpush.msra.mxu0 %v426
      %442 = vmatpush.msra.mxu0 %v425
      %443 = vmatpush.msra.mxu0 %v424
      %444 = vmatpush.msra.mxu0 %v423
      %445 = vmatpush.msra.mxu0 %v422
      %446 = vmatpush.msra.mxu0 %v421
      %447 = vmatpush.msra.mxu0 %v420
      %448 = vmatpush.msra.mxu0 %v419
      %449 = vmatpush.msra.mxu0 %v418
      %450 = vmatpush.msra.mxu0 %v417
      %451 = vmatpush.msra.mxu0 %v416
      %452 = vmatmul.f32.gmra.mxu0 %v400
      %v453 = vpop.f32.mrf.mxu0
      %v454 = vadd.f32 %v434, %v453
      %455 = vmatmul.f32.gmra.mxu0 %v401
      %v456 = vpop.f32.mrf.mxu0
      %v457 = vadd.f32 %v434, %v456
      %458 = vmatmul.f32.gmra.mxu0 %v402
      %v459 = vpop.f32.mrf.mxu0
      %v460 = vadd.f32 %v434, %v459
      %461 = vmatmul.f32.gmra.mxu0 %v403
      %v462 = vpop.f32.mrf.mxu0
      %v463 = vadd.f32 %v434, %v462
      %464 = vmatmul.f32.gmra.mxu0 %v404
      %v465 = vpop.f32.mrf.mxu0
      %v466 = vadd.f32 %v434, %v465
      %467 = vmatmul.f32.gmra.mxu0 %v405
      %v468 = vpop.f32.mrf.mxu0
      %v469 = vadd.f32 %v434, %v468
      %470 = vmatmul.f32.gmra.mxu0 %v406
      %v471 = vpop.f32.mrf.mxu0
      %v472 = vadd.f32 %v434, %v471
      %473 = vmatmul.f32.gmra.mxu0 %v407
      %v474 = vpop.f32.mrf.mxu0
      %v475 = vadd.f32 %v434, %v474
      %476 = vmatmul.f32.gmra.mxu0 %v408
      %v477 = vpop.f32.mrf.mxu0
      %v478 = vadd.f32 %v434, %v477
      %479 = vmatmul.f32.gmra.mxu0 %v409
      %v480 = vpop.f32.mrf.mxu0
      %v481 = vadd.f32 %v434, %v480
      %482 = vmatmul.f32.gmra.mxu0 %v410
      %v483 = vpop.f32.mrf.mxu0
      %v484 = vadd.f32 %v434, %v483
      %485 = vmatmul.f32.gmra.mxu0 %v411
      %v486 = vpop.f32.mrf.mxu0
      %v487 = vadd.f32 %v434, %v486
      %488 = vmatmul.f32.gmra.mxu0 %v412
      %v489 = vpop.f32.mrf.mxu0
      %v490 = vadd.f32 %v434, %v489
      %491 = vmatmul.f32.gmra.mxu0 %v413
      %v492 = vpop.f32.mrf.mxu0
      %v493 = vadd.f32 %v434, %v492
      %494 = vmatmul.f32.gmra.mxu0 %v414
      %v495 = vpop.f32.mrf.mxu0
      %v496 = vadd.f32 %v434, %v495
      %497 = vmatmul.f32.gmra.mxu0 %v415
      %v498 = vpop.f32.mrf.mxu0
      %v499 = vadd.f32 %v434, %v498
      %500 = vdwg.mxu0
      %vm501 = vcmask 80896
      %502 = vst.msk [vmem:[%s226] sm:$0xff] %vm501, %v454
      %503 = vst.msk [vmem:[%s226 + $0x8] sm:$0xff] %vm501, %v457
      %504 = vst.msk [vmem:[%s226 + $0x10] sm:$0xff] %vm501, %v460
      %505 = vst.msk [vmem:[%s226 + $0x18] sm:$0xff] %vm501, %v463
      %506 = vst.msk [vmem:[%s226 + $0x20] sm:$0xff] %vm501, %v466
      %507 = vst.msk [vmem:[%s226 + $0x28] sm:$0xff] %vm501, %v469
      %508 = vst.msk [vmem:[%s226 + $0x30] sm:$0xff] %vm501, %v472
      %509 = vst.msk [vmem:[%s226 + $0x38] sm:$0xff] %vm501, %v475
      %510 = vst.msk [vmem:[%s226 + $0x40] sm:$0xff] %vm501, %v478
      %511 = vst.msk [vmem:[%s226 + $0x48] sm:$0xff] %vm501, %v481
      %512 = vst.msk [vmem:[%s226 + $0x50] sm:$0xff] %vm501, %v484
      %513 = vst.msk [vmem:[%s226 + $0x58] sm:$0xff] %vm501, %v487
      %514 = vst.msk [vmem:[%s226 + $0x60] sm:$0xff] %vm501, %v490
      %515 = vst.msk [vmem:[%s226 + $0x68] sm:$0xff] %vm501, %v493
      %516 = vst.msk [vmem:[%s226 + $0x70] sm:$0xff] %vm501, %v496
      %517 = vst.msk [vmem:[%s226 + $0x78] sm:$0xff] %vm501, %v499
      %s518 = smul.u32 16, %s16
      %p519 = scmp.lt.s32.totalorder %s518, 31
      %s520 = scalar_select %p519, %s518, 31
      %s521 = smul.addr %s520, 8
      %s522 = scalar_lea.vmem %s5, %s521
      // Predicated region
      $region41: #{tpu_custom_call.1} parent=39 // pred_check
        %p523 = pneg %p144
      $region42: #{tpu_custom_call.1} parent=39 // pred_check_branch
        %525 = sbr.rel (%p523) target = $region44
      $region43: #{tpu_custom_call.1} parent=39 // pred_region
        %s526 = smul.u32 16, %s16
      $region44: #{tpu_custom_call.1} parent=39 // pred_fallthru
        _
    $region40: #{tpu_custom_call.1} parent=5 // pred_fallthru
      _
    %p527 = scmp.le.s32.totalorder 2, %s11
    // Predicated region
    $region45: #{tpu_custom_call.1} parent=5 // pred_check
      %p528 = pneg %p527
    $region46: #{tpu_custom_call.1} parent=5 // pred_check_branch
      %530 = sbr.rel (%p528) target = $region48
    $region47: #{tpu_custom_call.1} parent=5 // pred_region
      %s531 = ssub.s32 %s11, 2
      // Predicated region
      $region49: #{tpu_custom_call.1} parent=47 // pred_check
        %p532 = pneg %p150
      $region50: #{tpu_custom_call.1} parent=47 // pred_check_branch
        %534 = sbr.rel (%p532) target = $region52
      $region51: #{tpu_custom_call.1} parent=47 // pred_region
        %s535 = smul.u32 16, %s17
        %p536 = scmp.lt.s32.totalorder %s535, 31
        %s537 = scalar_select %p536, %s535, 31
        %s538 = smul.addr %s537, 8
        %s539 = scalar_lea.vmem %s5, %s538
      $region52: #{tpu_custom_call.1} parent=47 // pred_fallthru
        _
    $region48: #{tpu_custom_call.1} parent=5 // pred_fallthru
      _
  $region6: #{tpu_custom_call.1} parent=0 // loop_footer
    %s15 = sadd.s32 1, %s11
  $region7: #{tpu_custom_call.1} parent=0 // loop_footer_branch
    %10 = sbr.rel target = $region3
  $region8: #{tpu_custom_call.1} parent=0 // loop_exit
    _

// kernel: tpu_custom_call.1
$region0: #{tpu_custom_call.1}
  #allocation0 [shape = 'u32[]', space=smem, size = 0x4, offset = 0x4, fixed_abs, tag = 'smem constant byte address 0x4 - core index']
  #allocation1 [shape = 'u32[72,128]{1,0:T(1,128)}', space=vmem, size = 0x9000, scoped, tag = 'internal scratch']
  #allocation2 [shape = 'f32[128,128]{1,0:T(8,128)}', space=vmem, size = 0x10000, scoped, tag = 'scratch operand']
  %s0 = inlined_call_operand.vmem [shape: f32[256,48], index: 0, kind: input, shape index: {}]
  %s1 = inlined_call_operand.vmem [shape: f32[48,128], index: 1, kind: input, shape index: {}]
  %s2 = inlined_call_operand.vmem [shape: f32[1,128], index: 2, kind: input, shape index: {}]
  %s3 = inlined_call_operand.vmem [shape: f32[128,10], index: 3, kind: input, shape index: {}]
  %s4 = inlined_call_operand.vmem [shape: f32[1,10], index: 4, kind: input, shape index: {}]
  %s5 = inlined_call_operand.vmem [shape: f32[256,10], index: 5, kind: output, shape index: {}]
  %s6 = sld [smem:[#allocation0]]
  $region53: #{tpu_custom_call.1} parent=0
    _
  %s8 = ssub.s32 1, %s6
  %s9 = scalar_select 0, %s8, %s6
  loop: start=0, step=1, limit=4
  $region2: #{tpu_custom_call.1} parent=0 // loop_pre_header
    _
  $region3: #{tpu_custom_call.1} parent=0 // loop_header
    %s11 = sphi 0, %s15
    %p12 = scmp.ge.s32.totalorder %s11, 4
    %s21 = sphi 0, %s23
    %s24 = sphi 0, %s21
    %s25 = sphi 0, %s24
    %s41 = sphi 0, %s25
    %s45 = sphi 0, %s45
    %s47 = sphi 0, %s45
    %s48 = sphi 0, %s47
    %s62 = sphi 0, %s48
    %s66 = sphi 0, %s66
    %s68 = sphi 0, %s66
    %s69 = sphi 0, %s68
    %s83 = sphi 0, %s69
    %s87 = sphi 0, %s87
    %s89 = sphi 0, %s87
    %s90 = sphi 0, %s89
    %s104 = sphi 0, %s90
    %s108 = sphi 0, %s108
    %s110 = sphi 0, %s108
    %s111 = sphi 0, %s110
    %s125 = sphi 0, %s111
    %s131 = sphi 0, %s133
    %s134 = sphi 0, %s131
    %s135 = sphi 0, %s134
    %s151 = sphi 0, %s135
  $region4: #{tpu_custom_call.1} parent=0 // loop_header_branch
    %14 = sbr.rel (%p12) target = $region8
  $region5: #{tpu_custom_call.1} parent=0 // loop_body
    %s16 = ssub.s32 %s11, 1
    %s17 = ssub.s32 %s11, 2
    %s18 = sadd.s32 %s11, 1
    %s19 = ssub.s32 %s11, %s18
    %p20 = scmp.eq.s32.totalorder %s19, 0
    %s22 = sadd.s32 %s21, 1
    %s23 = scalar_select %p20, %s21, %s22
    %p26 = pneg %p20
    %p27 = scmp.eq.s32.totalorder %s11, 1
    %p28 = por %p26, %p27
    %p29 = scmp.ne.s32.totalorder %s21, %s24
    %p30 = scmp.eq.s32.totalorder %s11, 0
    %p31 = por %p29, %p30
    %p32 = scmp.ne.s32.totalorder %s21, %s24
    %p33 = scmp.eq.s32.totalorder %s16, 1
    %p34 = por %p32, %p33
    %p35 = scmp.ne.s32.totalorder %s24, %s25
    %p36 = scmp.eq.s32.totalorder %s16, 0
    %p37 = por %p35, %p36
    %p38 = scmp.ne.s32.totalorder %s24, %s25
    %p39 = scmp.eq.s32.totalorder %s17, 1
    %p40 = por %p38, %p39
    %p42 = scmp.ne.s32.totalorder %s25, %s41
    %p43 = scmp.eq.s32.totalorder %s17, 0
    %p44 = por %p42, %p43
    %s46 = sadd.s32 %s45, 1
    %p49 = scmp.eq.s32.totalorder %s11, 1
    %p50 = scmp.ne.s32.totalorder %s45, %s47
    %p51 = scmp.eq.s32.totalorder %s11, 0
    %p52 = por %p50, %p51
    %p53 = scmp.ne.s32.totalorder %s45, %s47
    %p54 = scmp.eq.s32.totalorder %s16, 1
    %p55 = por %p53, %p54
    %p56 = scmp.ne.s32.totalorder %s47, %s48
    %p57 = scmp.eq.s32.totalorder %s16, 0
    %p58 = por %p56, %p57
    %p59 = scmp.ne.s32.totalorder %s47, %s48
    %p60 = scmp.eq.s32.totalorder %s17, 1
    %p61 = por %p59, %p60
    %p63 = scmp.ne.s32.totalorder %s48, %s62
    %p64 = scmp.eq.s32.totalorder %s17, 0
    %p65 = por %p63, %p64
    %s67 = sadd.s32 %s66, 1
    %p70 = scmp.eq.s32.totalorder %s11, 1
    %p71 = scmp.ne.s32.totalorder %s66, %s68
    %p72 = scmp.eq.s32.totalorder %s11, 0
    %p73 = por %p71, %p72
    %p74 = scmp.ne.s32.totalorder %s66, %s68
    %p75 = scmp.eq.s32.totalorder %s16, 1
    %p76 = por %p74, %p75
    %p77 = scmp.ne.s32.totalorder %s68, %s69
    %p78 = scmp.eq.s32.totalorder %s16, 0
    %p79 = por %p77, %p78
    %p80 = scmp.ne.s32.totalorder %s68, %s69
    %p81 = scmp.eq.s32.totalorder %s17, 1
    %p82 = por %p80, %p81
    %p84 = scmp.ne.s32.totalorder %s69, %s83
    %p85 = scmp.eq.s32.totalorder %s17, 0
    %p86 = por %p84, %p85
    %s88 = sadd.s32 %s87, 1
    %p91 = scmp.eq.s32.totalorder %s11, 1
    %p92 = scmp.ne.s32.totalorder %s87, %s89
    %p93 = scmp.eq.s32.totalorder %s11, 0
    %p94 = por %p92, %p93
    %p95 = scmp.ne.s32.totalorder %s87, %s89
    %p96 = scmp.eq.s32.totalorder %s16, 1
    %p97 = por %p95, %p96
    %p98 = scmp.ne.s32.totalorder %s89, %s90
    %p99 = scmp.eq.s32.totalorder %s16, 0
    %p100 = por %p98, %p99
    %p101 = scmp.ne.s32.totalorder %s89, %s90
    %p102 = scmp.eq.s32.totalorder %s17, 1
    %p103 = por %p101, %p102
    %p105 = scmp.ne.s32.totalorder %s90, %s104
    %p106 = scmp.eq.s32.totalorder %s17, 0
    %p107 = por %p105, %p106
    %s109 = sadd.s32 %s108, 1
    %p112 = scmp.eq.s32.totalorder %s11, 1
    %p113 = scmp.ne.s32.totalorder %s108, %s110
    %p114 = scmp.eq.s32.totalorder %s11, 0
    %p115 = por %p113, %p114
    %p116 = scmp.ne.s32.totalorder %s108, %s110
    %p117 = scmp.eq.s32.totalorder %s16, 1
    %p118 = por %p116, %p117
    %p119 = scmp.ne.s32.totalorder %s110, %s111
    %p120 = scmp.eq.s32.totalorder %s16, 0
    %p121 = por %p119, %p120
    %p122 = scmp.ne.s32.totalorder %s110, %s111
    %p123 = scmp.eq.s32.totalorder %s17, 1
    %p124 = por %p122, %p123
    %p126 = scmp.ne.s32.totalorder %s111, %s125
    %p127 = scmp.eq.s32.totalorder %s17, 0
    %p128 = por %p126, %p127
    %s129 = ssub.s32 %s11, %s18
    %p130 = scmp.eq.s32.totalorder %s129, 0
    %s132 = sadd.s32 %s131, 1
    %s133 = scalar_select %p130, %s131, %s132
    %p136 = pneg %p130
    %p137 = scmp.eq.s32.totalorder %s11, 1
    %p138 = por %p136, %p137
    %p139 = scmp.ne.s32.totalorder %s131, %s134
    %p140 = scmp.eq.s32.totalorder %s11, 0
    %p141 = por %p139, %p140
    %p142 = scmp.ne.s32.totalorder %s131, %s134
    %p143 = scmp.eq.s32.totalorder %s16, 1
    %p144 = por %p142, %p143
    %p145 = scmp.ne.s32.totalorder %s134, %s135
    %p146 = scmp.eq.s32.totalorder %s16, 0
    %p147 = por %p145, %p146
    %p148 = scmp.ne.s32.totalorder %s134, %s135
    %p149 = scmp.eq.s32.totalorder %s17, 1
    %p150 = por %p148, %p149
    %p152 = scmp.ne.s32.totalorder %s135, %s151
    %p153 = scmp.eq.s32.totalorder %s17, 0
    %p154 = por %p152, %p153
    %p155 = scmp.le.s32.totalorder 1, %s11
    %p156 = scmp.lt.s32.totalorder %s11, 3
    %p157 = pnand %p155, %p156
    %p158 = pneg %p157
    // Predicated region
    $region9: #{tpu_custom_call.1} parent=5 // pred_check
      _
    $region10: #{tpu_custom_call.1} parent=5 // pred_check_branch
      %160 = sbr.rel (%p157) target = $region12
    $region11: #{tpu_custom_call.1} parent=5 // pred_region
      %s161 = ssub.s32 %s11, 1
      // Predicated region
      $region13: #{tpu_custom_call.1} parent=11 // pred_check
        %p162 = pneg %p58
      $region14: #{tpu_custom_call.1} parent=11 // pred_check_branch
        %164 = sbr.rel (%p162) target = $region16
      $region15: #{tpu_custom_call.1} parent=11 // pred_region
        _
      $region16: #{tpu_custom_call.1} parent=11 // pred_fallthru
        _
      // Predicated region
      $region17: #{tpu_custom_call.1} parent=11 // pred_check
        %p165 = pneg %p79
      $region18: #{tpu_custom_call.1} parent=11 // pred_check_branch
        %167 = sbr.rel (%p165) target = $region20
      $region19: #{tpu_custom_call.1} parent=11 // pred_region
        _
      $region20: #{tpu_custom_call.1} parent=11 // pred_fallthru
        _
      // Predicated region
      $region21: #{tpu_custom_call.1} parent=11 // pred_check
        %p168 = pneg %p100
      $region22: #{tpu_custom_call.1} parent=11 // pred_check_branch
        %170 = sbr.rel (%p168) target = $region24
      $region23: #{tpu_custom_call.1} parent=11 // pred_region
        _
      $region24: #{tpu_custom_call.1} parent=11 // pred_fallthru
        _
      // Predicated region
      $region25: #{tpu_custom_call.1} parent=11 // pred_check
        %p171 = pneg %p121
      $region26: #{tpu_custom_call.1} parent=11 // pred_check_branch
        %173 = sbr.rel (%p171) target = $region28
      $region27: #{tpu_custom_call.1} parent=11 // pred_region
        _
      $region28: #{tpu_custom_call.1} parent=11 // pred_fallthru
        _
    $region12: #{tpu_custom_call.1} parent=5 // pred_fallthru
      _
    %p174 = scmp.lt.s32.totalorder %s11, 2
    // Predicated region
    $region29: #{tpu_custom_call.1} parent=5 // pred_check
      %p175 = pneg %p174
    $region30: #{tpu_custom_call.1} parent=5 // pred_check_branch
      %177 = sbr.rel (%p175) target = $region32
    $region31: #{tpu_custom_call.1} parent=5 // pred_region
      // Predicated region
      $region33: #{tpu_custom_call.1} parent=31 // pred_check
        %p178 = pneg %p31
      $region34: #{tpu_custom_call.1} parent=31 // pred_check_branch
        %180 = sbr.rel (%p178) target = $region36
      $region35: #{tpu_custom_call.1} parent=31 // pred_region
        %s181 = smul.u32 16, %s11
        %p182 = scmp.lt.s32.totalorder %s181, 31
        %s183 = scalar_select %p182, %s181, 31
        %s184 = smul.addr %s183, 8
        %s185 = scalar_lea.vmem %s0, %s184
        %s186 = smul.u32 16, %s11
      $region36: #{tpu_custom_call.1} parent=31 // pred_fallthru
        _
    $region32: #{tpu_custom_call.1} parent=5 // pred_fallthru
      _
    %p187 = scmp.le.s32.totalorder 1, %s11
    %p188 = scmp.lt.s32.totalorder %s11, 3
    %p189 = pnand %p187, %p188
    %p190 = pneg %p189
    // Predicated region
    $region37: #{tpu_custom_call.1} parent=5 // pred_check
      _
    $region38: #{tpu_custom_call.1} parent=5 // pred_check_branch
      %192 = sbr.rel (%p189) target = $region40
    $region39: #{tpu_custom_call.1} parent=5 // pred_region
      %s193 = ssub.s32 %s11, 1
      %s194 = smul.u32 16, %s16
      %p195 = scmp.lt.s32.totalorder %s194, 31
      %s196 = scalar_select %p195, %s194, 31
      %s197 = smul.addr %s196, 8
      %s198 = scalar_lea.vmem %s0, %s197
      %p199 = pneg %p37
      %p200 = pneg %p34
      %p201 = pneg %p58
      %p202 = pneg %p55
      %p203 = pneg %p79
      %p204 = pneg %p76
      %p205 = pneg %p100
      %p206 = pneg %p97
      %p207 = pneg %p121
      %p208 = pneg %p118
      %p209 = pneg %p147
      %p210 = pneg %p144
      %s211 = smul.u32 16, %s16
      %p212 = scmp.lt.s32.totalorder %s211, 31
      %s213 = scalar_select %p212, %s211, 31
      %s214 = smul.addr %s213, 8
      %s215 = scalar_lea.vmem %s5, %s214
      %s216 = smul.u32 16, %s16
      %p217 = scmp.lt.s32.totalorder %s216, 31
      %s218 = scalar_select %p217, %s216, 31
      %s219 = smul.addr %s218, 8
      %s220 = scalar_lea.vmem %s0, %s219
      %s221 = smul.u32 16, %s16
      %s222 = smul.u32 16, %s16
      %p223 = scmp.lt.s32.totalorder %s222, 31
      %s224 = scalar_select %p223, %s222, 31
      %s225 = smul.addr %s224, 8
      %s226 = scalar_lea.vmem %s5, %s225
      %s227 = smul.u32 16, %s16
      %v228 = vld [vmem:[%s220] sm:$0xff]
      %v229 = vld [vmem:[%s220 + $0x8] sm:$0xff]
      %v230 = vld [vmem:[%s220 + $0x10] sm:$0xff]
      %v231 = vld [vmem:[%s220 + $0x18] sm:$0xff]
      %v232 = vld [vmem:[%s220 + $0x20] sm:$0xff]
      %v233 = vld [vmem:[%s220 + $0x28] sm:$0xff]
      %v234 = vld [vmem:[%s220 + $0x30] sm:$0xff]
      %v235 = vld [vmem:[%s220 + $0x38] sm:$0xff]
      %v236 = vld [vmem:[%s220 + $0x40] sm:$0xff]
      %v237 = vld [vmem:[%s220 + $0x48] sm:$0xff]
      %v238 = vld [vmem:[%s220 + $0x50] sm:$0xff]
      %v239 = vld [vmem:[%s220 + $0x58] sm:$0xff]
      %v240 = vld [vmem:[%s220 + $0x60] sm:$0xff]
      %v241 = vld [vmem:[%s220 + $0x68] sm:$0xff]
      %v242 = vld [vmem:[%s220 + $0x70] sm:$0xff]
      %v243 = vld [vmem:[%s220 + $0x78] sm:$0xff]
      %v244 = vld [vmem:[%s1] sm:$0xff]
      %v245 = vld [vmem:[%s1 + $0x8] sm:$0xff]
      %v246 = vld [vmem:[%s1 + $0x10] sm:$0xff]
      %v247 = vld [vmem:[%s1 + $0x18] sm:$0xff]
      %v248 = vld [vmem:[%s1 + $0x20] sm:$0xff]
      %v249 = vld [vmem:[%s1 + $0x28] sm:$0xff]
      %v250 = vld [vmem:[%s2] sm:$0x1]
      %v252 = vperm.slane %v250, 0
      %vm254 = vcmask 392192
      %v256 = vsel %vm254, %v228, 0
      %v259 = vsel %vm254, %v229, 0
      %v262 = vsel %vm254, %v230, 0
      %v265 = vsel %vm254, %v231, 0
      %v268 = vsel %vm254, %v232, 0
      %v271 = vsel %vm254, %v233, 0
      %v274 = vsel %vm254, %v234, 0
      %v277 = vsel %vm254, %v235, 0
      %v280 = vsel %vm254, %v236, 0
      %v283 = vsel %vm254, %v237, 0
      %v286 = vsel %vm254, %v238, 0
      %v289 = vsel %vm254, %v239, 0
      %v292 = vsel %vm254, %v240, 0
      %v295 = vsel %vm254, %v241, 0
      %v298 = vsel %vm254, %v242, 0
      %v301 = vsel %vm254, %v243, 0
      %303 = vmatpush.msra.mxu0 0.0
      %304 = vmatpush.msra.mxu0 0.0
      %305 = vmatpush.msra.mxu0 0.0
      %306 = vmatpush.msra.mxu0 0.0
      %307 = vmatpush.msra.mxu0 0.0
      %308 = vmatpush.msra.mxu0 0.0
      %309 = vmatpush.msra.mxu0 0.0
      %310 = vmatpush.msra.mxu0 0.0
      %311 = vmatpush.msra.mxu0 0.0
      %312 = vmatpush.msra.mxu0 0.0
      %313 = vmatpush.msra.mxu0 %v249
      %314 = vmatpush.msra.mxu0 %v248
      %315 = vmatpush.msra.mxu0 %v247
      %316 = vmatpush.msra.mxu0 %v246
      %317 = vmatpush.msra.mxu0 %v245
      %318 = vmatpush.msra.mxu0 %v244
      %319 = vmatmul.f32.gmra.mxu0 %v256
      %v320 = vpop.f32.mrf.mxu0
      %v321 = vadd.f32 %v252, %v320
      %322 = vmatmul.f32.gmra.mxu0 %v259
      %v323 = vpop.f32.mrf.mxu0
      %v324 = vadd.f32 %v252, %v323
      %325 = vmatmul.f32.gmra.mxu0 %v262
      %v326 = vpop.f32.mrf.mxu0
      %v327 = vadd.f32 %v252, %v326
      %328 = vmatmul.f32.gmra.mxu0 %v265
      %v329 = vpop.f32.mrf.mxu0
      %v330 = vadd.f32 %v252, %v329
      %331 = vmatmul.f32.gmra.mxu0 %v268
      %v332 = vpop.f32.mrf.mxu0
      %v333 = vadd.f32 %v252, %v332
      %334 = vmatmul.f32.gmra.mxu0 %v271
      %v335 = vpop.f32.mrf.mxu0
      %v336 = vadd.f32 %v252, %v335
      %337 = vmatmul.f32.gmra.mxu0 %v274
      %v338 = vpop.f32.mrf.mxu0
      %v339 = vadd.f32 %v252, %v338
      %340 = vmatmul.f32.gmra.mxu0 %v277
      %v341 = vpop.f32.mrf.mxu0
      %v342 = vadd.f32 %v252, %v341
      %343 = vmatmul.f32.gmra.mxu0 %v280
      %v344 = vpop.f32.mrf.mxu0
      %v345 = vadd.f32 %v252, %v344
      %346 = vmatmul.f32.gmra.mxu0 %v283
      %v347 = vpop.f32.mrf.mxu0
      %v348 = vadd.f32 %v252, %v347
      %349 = vmatmul.f32.gmra.mxu0 %v286
      %v350 = vpop.f32.mrf.mxu0
      %v351 = vadd.f32 %v252, %v350
      %352 = vmatmul.f32.gmra.mxu0 %v289
      %v353 = vpop.f32.mrf.mxu0
      %v354 = vadd.f32 %v252, %v353
      %355 = vmatmul.f32.gmra.mxu0 %v292
      %v356 = vpop.f32.mrf.mxu0
      %v357 = vadd.f32 %v252, %v356
      %358 = vmatmul.f32.gmra.mxu0 %v295
      %v359 = vpop.f32.mrf.mxu0
      %v360 = vadd.f32 %v252, %v359
      %361 = vmatmul.f32.gmra.mxu0 %v298
      %v362 = vpop.f32.mrf.mxu0
      %v363 = vadd.f32 %v252, %v362
      %364 = vmatmul.f32.gmra.mxu0 %v301
      %v365 = vpop.f32.mrf.mxu0
      %v366 = vadd.f32 %v252, %v365
      %367 = vdwg.mxu0
      %v368 = vmax.f32 %v321, 0.0
      %v369 = vmax.f32 %v324, 0.0
      %v370 = vmax.f32 %v327, 0.0
      %v371 = vmax.f32 %v330, 0.0
      %v372 = vmax.f32 %v333, 0.0
      %v373 = vmax.f32 %v336, 0.0
      %v374 = vmax.f32 %v339, 0.0
      %v375 = vmax.f32 %v342, 0.0
      %v376 = vmax.f32 %v345, 0.0
      %v377 = vmax.f32 %v348, 0.0
      %v378 = vmax.f32 %v351, 0.0
      %v379 = vmax.f32 %v354, 0.0
      %v380 = vmax.f32 %v357, 0.0
      %v381 = vmax.f32 %v360, 0.0
      %v382 = vmax.f32 %v363, 0.0
      %v383 = vmax.f32 %v366, 0.0
      %384 = vst [vmem:[#allocation2] sm:$0xff] %v368
      %385 = vst [vmem:[#allocation2 + $0x8] sm:$0xff] %v369
      %386 = vst [vmem:[#allocation2 + $0x10] sm:$0xff] %v370
      %387 = vst [vmem:[#allocation2 + $0x18] sm:$0xff] %v371
      %388 = vst [vmem:[#allocation2 + $0x20] sm:$0xff] %v372
      %389 = vst [vmem:[#allocation2 + $0x28] sm:$0xff] %v373
      %390 = vst [vmem:[#allocation2 + $0x30] sm:$0xff] %v374
      %391 = vst [vmem:[#allocation2 + $0x38] sm:$0xff] %v375
      %392 = vst [vmem:[#allocation2 + $0x40] sm:$0xff] %v376
      %393 = vst [vmem:[#allocation2 + $0x48] sm:$0xff] %v377
      %394 = vst [vmem:[#allocation2 + $0x50] sm:$0xff] %v378
      %395 = vst [vmem:[#allocation2 + $0x58] sm:$0xff] %v379
      %396 = vst [vmem:[#allocation2 + $0x60] sm:$0xff] %v380
      %397 = vst [vmem:[#allocation2 + $0x68] sm:$0xff] %v381
      %398 = vst [vmem:[#allocation2 + $0x70] sm:$0xff] %v382
      %399 = vst [vmem:[#allocation2 + $0x78] sm:$0xff] %v383
      %v400 = vld [vmem:[#allocation2] sm:$0xff]
      %v401 = vld [vmem:[#allocation2 + $0x8] sm:$0xff]
      %v402 = vld [vmem:[#allocation2 + $0x10] sm:$0xff]
      %v403 = vld [vmem:[#allocation2 + $0x18] sm:$0xff]
      %v404 = vld [vmem:[#allocation2 + $0x20] sm:$0xff]
      %v405 = vld [vmem:[#allocation2 + $0x28] sm:$0xff]
      %v406 = vld [vmem:[#allocation2 + $0x30] sm:$0xff]
      %v407 = vld [vmem:[#allocation2 + $0x38] sm:$0xff]
      %v408 = vld [vmem:[#allocation2 + $0x40] sm:$0xff]
      %v409 = vld [vmem:[#allocation2 + $0x48] sm:$0xff]
      %v410 = vld [vmem:[#allocation2 + $0x50] sm:$0xff]
      %v411 = vld [vmem:[#allocation2 + $0x58] sm:$0xff]
      %v412 = vld [vmem:[#allocation2 + $0x60] sm:$0xff]
      %v413 = vld [vmem:[#allocation2 + $0x68] sm:$0xff]
      %v414 = vld [vmem:[#allocation2 + $0x70] sm:$0xff]
      %v415 = vld [vmem:[#allocation2 + $0x78] sm:$0xff]
      %v416 = vld [vmem:[%s3] sm:$0xff]
      %v417 = vld [vmem:[%s3 + $0x8] sm:$0xff]
      %v418 = vld [vmem:[%s3 + $0x10] sm:$0xff]
      %v419 = vld [vmem:[%s3 + $0x18] sm:$0xff]
      %v420 = vld [vmem:[%s3 + $0x20] sm:$0xff]
      %v421 = vld [vmem:[%s3 + $0x28] sm:$0xff]
      %v422 = vld [vmem:[%s3 + $0x30] sm:$0xff]
      %v423 = vld [vmem:[%s3 + $0x38] sm:$0xff]
      %v424 = vld [vmem:[%s3 + $0x40] sm:$0xff]
      %v425 = vld [vmem:[%s3 + $0x48] sm:$0xff]
      %v426 = vld [vmem:[%s3 + $0x50] sm:$0xff]
      %v427 = vld [vmem:[%s3 + $0x58] sm:$0xff]
      %v428 = vld [vmem:[%s3 + $0x60] sm:$0xff]
      %v429 = vld [vmem:[%s3 + $0x68] sm:$0xff]
      %v430 = vld [vmem:[%s3 + $0x70] sm:$0xff]
      %v431 = vld [vmem:[%s3 + $0x78] sm:$0xff]
      %v432 = vld [vmem:[%s4] sm:$0x1]
      %v434 = vperm.slane %v432, 0
      %436 = vmatpush.msra.mxu0 %v431
      %437 = vmatpush.msra.mxu0 %v430
      %438 = vmatpush.msra.mxu0 %v429
      %439 = vmatpush.msra.mxu0 %v428
      %440 = vmatpush.msra.mxu0 %v427
      %441 = vmatpush.msra.mxu0 %v426
      %442 = vmatpush.msra.mxu0 %v425
      %443 = vmatpush.msra.mxu0 %v424
      %444 = vmatpush.msra.mxu0 %v423
      %445 = vmatpush.msra.mxu0 %v422
      %446 = vmatpush.msra.mxu0 %v421
      %447 = vmatpush.msra.mxu0 %v420
      %448 = vmatpush.msra.mxu0 %v419
      %449 = vmatpush.msra.mxu0 %v418
      %450 = vmatpush.msra.mxu0 %v417
      %451 = vmatpush.msra.mxu0 %v416
      %452 = vmatmul.f32.gmra.mxu0 %v400
      %v453 = vpop.f32.mrf.mxu0
      %v454 = vadd.f32 %v434, %v453
      %455 = vmatmul.f32.gmra.mxu0 %v401
      %v456 = vpop.f32.mrf.mxu0
      %v457 = vadd.f32 %v434, %v456
      %458 = vmatmul.f32.gmra.mxu0 %v402
      %v459 = vpop.f32.mrf.mxu0
      %v460 = vadd.f32 %v434, %v459
      %461 = vmatmul.f32.gmra.mxu0 %v403
      %v462 = vpop.f32.mrf.mxu0
      %v463 = vadd.f32 %v434, %v462
      %464 = vmatmul.f32.gmra.mxu0 %v404
      %v465 = vpop.f32.mrf.mxu0
      %v466 = vadd.f32 %v434, %v465
      %467 = vmatmul.f32.gmra.mxu0 %v405
      %v468 = vpop.f32.mrf.mxu0
      %v469 = vadd.f32 %v434, %v468
      %470 = vmatmul.f32.gmra.mxu0 %v406
      %v471 = vpop.f32.mrf.mxu0
      %v472 = vadd.f32 %v434, %v471
      %473 = vmatmul.f32.gmra.mxu0 %v407
      %v474 = vpop.f32.mrf.mxu0
      %v475 = vadd.f32 %v434, %v474
      %476 = vmatmul.f32.gmra.mxu0 %v408
      %v477 = vpop.f32.mrf.mxu0
      %v478 = vadd.f32 %v434, %v477
      %479 = vmatmul.f32.gmra.mxu0 %v409
      %v480 = vpop.f32.mrf.mxu0
      %v481 = vadd.f32 %v434, %v480
      %482 = vmatmul.f32.gmra.mxu0 %v410
      %v483 = vpop.f32.mrf.mxu0
      %v484 = vadd.f32 %v434, %v483
      %485 = vmatmul.f32.gmra.mxu0 %v411
      %v486 = vpop.f32.mrf.mxu0
      %v487 = vadd.f32 %v434, %v486
      %488 = vmatmul.f32.gmra.mxu0 %v412
      %v489 = vpop.f32.mrf.mxu0
      %v490 = vadd.f32 %v434, %v489
      %491 = vmatmul.f32.gmra.mxu0 %v413
      %v492 = vpop.f32.mrf.mxu0
      %v493 = vadd.f32 %v434, %v492
      %494 = vmatmul.f32.gmra.mxu0 %v414
      %v495 = vpop.f32.mrf.mxu0
      %v496 = vadd.f32 %v434, %v495
      %497 = vmatmul.f32.gmra.mxu0 %v415
      %v498 = vpop.f32.mrf.mxu0
      %v499 = vadd.f32 %v434, %v498
      %500 = vdwg.mxu0
      %vm501 = vcmask 80896
      %502 = vst.msk [vmem:[%s226] sm:$0xff] %vm501, %v454
      %503 = vst.msk [vmem:[%s226 + $0x8] sm:$0xff] %vm501, %v457
      %504 = vst.msk [vmem:[%s226 + $0x10] sm:$0xff] %vm501, %v460
      %505 = vst.msk [vmem:[%s226 + $0x18] sm:$0xff] %vm501, %v463
      %506 = vst.msk [vmem:[%s226 + $0x20] sm:$0xff] %vm501, %v466
      %507 = vst.msk [vmem:[%s226 + $0x28] sm:$0xff] %vm501, %v469
      %508 = vst.msk [vmem:[%s226 + $0x30] sm:$0xff] %vm501, %v472
      %509 = vst.msk [vmem:[%s226 + $0x38] sm:$0xff] %vm501, %v475
      %510 = vst.msk [vmem:[%s226 + $0x40] sm:$0xff] %vm501, %v478
      %511 = vst.msk [vmem:[%s226 + $0x48] sm:$0xff] %vm501, %v481
      %512 = vst.msk [vmem:[%s226 + $0x50] sm:$0xff] %vm501, %v484
      %513 = vst.msk [vmem:[%s226 + $0x58] sm:$0xff] %vm501, %v487
      %514 = vst.msk [vmem:[%s226 + $0x60] sm:$0xff] %vm501, %v490
      %515 = vst.msk [vmem:[%s226 + $0x68] sm:$0xff] %vm501, %v493
      %516 = vst.msk [vmem:[%s226 + $0x70] sm:$0xff] %vm501, %v496
      %517 = vst.msk [vmem:[%s226 + $0x78] sm:$0xff] %vm501, %v499
      %s518 = smul.u32 16, %s16
      %p519 = scmp.lt.s32.totalorder %s518, 31
      %s520 = scalar_select %p519, %s518, 31
      %s521 = smul.addr %s520, 8
      %s522 = scalar_lea.vmem %s5, %s521
      // Predicated region
      $region41: #{tpu_custom_call.1} parent=39 // pred_check
        %p523 = pneg %p144
      $region42: #{tpu_custom_call.1} parent=39 // pred_check_branch
        %525 = sbr.rel (%p523) target = $region44
      $region43: #{tpu_custom_call.1} parent=39 // pred_region
        %s526 = smul.u32 16, %s16
      $region44: #{tpu_custom_call.1} parent=39 // pred_fallthru
        _
    $region40: #{tpu_custom_call.1} parent=5 // pred_fallthru
      _
    %p527 = scmp.le.s32.totalorder 2, %s11
    // Predicated region
    $region45: #{tpu_custom_call.1} parent=5 // pred_check
      %p528 = pneg %p527
    $region46: #{tpu_custom_call.1} parent=5 // pred_check_branch
      %530 = sbr.rel (%p528) target = $region48
    $region47: #{tpu_custom_call.1} parent=5 // pred_region
      %s531 = ssub.s32 %s11, 2
      // Predicated region
      $region49: #{tpu_custom_call.1} parent=47 // pred_check
        %p532 = pneg %p150
      $region50: #{tpu_custom_call.1} parent=47 // pred_check_branch
        %534 = sbr.rel (%p532) target = $region52
      $region51: #{tpu_custom_call.1} parent=47 // pred_region
        %s535 = smul.u32 16, %s17
        %p536 = scmp.lt.s32.totalorder %s535, 31
        %s537 = scalar_select %p536, %s535, 31
        %s538 = smul.addr %s537, 8
        %s539 = scalar_lea.vmem %s5, %s538
      $region52: #{tpu_custom_call.1} parent=47 // pred_fallthru
        _
    $region48: #{tpu_custom_call.1} parent=5 // pred_fallthru
      _
  $region6: #{tpu_custom_call.1} parent=0 // loop_footer
    %s15 = sadd.s32 1, %s11
  $region7: #{tpu_custom_call.1} parent=0 // loop_footer_branch
    %10 = sbr.rel target = $region3
  $region8: #{tpu_custom_call.1} parent=0 // loop_exit
    _

</llo_original>
